<compile_context>
chip_gen: v7x
topology: tpu7x:2x2x1
jax: 0.10.0
libtpu: 0.0.40
codegen_flags: <defaults>
</compile_context>

<pallas_src>
import math
import functools

import jax
import jax.numpy as jnp
from jax.experimental import pallas as pl
from jax.experimental.pallas import tpu as pltpu


_MASK_VALUE = -1e30  # finite stand-in for -inf (avoids NaN on masked rows)


def _round_up(x, m):
    return ((x + m - 1) // m) * m


def _flash_sdpa_kernel(*refs, scale, n_keys, tk, nq, nk, has_mask, need_kv_guard):
    """One (batch, q-tile, kv-tile) grid step of online-softmax attention."""
    if has_mask:
        (kvmap_ref, act_ref, mask_ref, q_ref, k_ref, v_ref,
         o_ref, m_sc, l_sc, acc_sc) = refs
    else:
        q_ref, k_ref, v_ref, o_ref, m_sc, l_sc, acc_sc = refs

    b = pl.program_id(0)
    qi = pl.program_id(1)
    ki = pl.program_id(2)

    @pl.when(ki == 0)
    def _init():
        m_sc[...] = jnp.full(m_sc.shape, -jnp.inf, m_sc.dtype)
        l_sc[...] = jnp.zeros(l_sc.shape, l_sc.dtype)
        acc_sc[...] = jnp.zeros(acc_sc.shape, acc_sc.dtype)

    def _update():
        # fold 1/sqrt(dk) into Q: tq*d multiplies instead of tq*tk on scores
        q = q_ref[...] * scale                                   # (tq, d)
        # scores = Q K^T: contract on last dims (no explicit K transpose)
        s = jax.lax.dot_general(
            q, k_ref[...], dimension_numbers=(((1,), (1,)), ((), ())),
            preferred_element_type=jnp.float32)                  # (tq, tk) f32

        if has_mask:
            # combined (self-attention | padding | key-pad) mask, int8 0/1
            s = jnp.where(mask_ref[...] != 0, _MASK_VALUE, s)
        if need_kv_guard:
            # mask-free ragged-N path only; interior tiles have
            # n_keys - ki*tk >= tk so only the last tile actually masks.
            col = jax.lax.broadcasted_iota(jnp.int32, s.shape, 1)
            s = jnp.where(col < n_keys - ki * tk, s, _MASK_VALUE)

        # online softmax update
        m_prev = m_sc[...]                                       # (tq, 1)
        m_new = jnp.maximum(m_prev, jnp.max(s, axis=-1, keepdims=True))
        alpha = jnp.exp(m_prev - m_new)
        # bf16 inputs -> bf16 exp + bf16 PV matmul (EUP/MXU native on v6e/v7x);
        # f32 inputs stay f32 (v5e has no bf16 VPU/EUP support).
        p_dtype = jnp.bfloat16 if v_ref.dtype == jnp.bfloat16 else jnp.float32
        p = jnp.exp((s - m_new).astype(p_dtype))

        l_sc[...] = alpha * l_sc[...] + jnp.sum(
            p, axis=-1, keepdims=True, dtype=jnp.float32)
        acc_sc[...] = alpha * acc_sc[...] + jax.lax.dot_general(
            p.astype(v_ref.dtype), v_ref[...],
            dimension_numbers=(((1,), (0,)), ((), ())),
            preferred_element_type=jnp.float32)
        m_sc[...] = m_new

    if has_mask:
        flat = (b * nq + qi) * nk + ki
        pl.when(act_ref[flat] != 0)(_update)     # skip fully-masked kv tiles
    else:
        _update()

    @pl.when(ki == nk - 1)
    def _finalize():
        l = l_sc[...]
        # fully-masked rows have l == 0: emit 0 instead of NaN
        inv_l = pl.reciprocal(jnp.where(l == 0.0, 1.0, l), approx=True)
        o_ref[...] = (acc_sc[...] * inv_l).astype(o_ref.dtype)


def sdpa(Q, K, V, mask_self_attention=None, mask_padding=None, *, dk=None,
         tq=None, tk=None):
    """SDPA(Q, K, V) = softmax(Q K^T / sqrt(dk)) V  (eval-mode dropout = identity)."""
    B, L, d = Q.shape
    _, N, _ = K.shape
    if dk is None:
        dk = d
    scale = 1.0 / math.sqrt(dk)

    has_mask = (mask_self_attention is not None) or (mask_padding is not None)

    # ---- tile sizes: multiples of 32 cover f32/bf16/int8 sublane rules; a
    #      block dim equal to the full (padded) array dim is always legal -----
    if tq is None:
        tq = min(512, _round_up(L, 32))
        if B == 1 and L > tq:
            # keep >= 2 parallel q tiles so both v7x TensorCores get work
            tq = min(tq, _round_up(-(-L // 2), 32))
    if tk is None:
        tk = _round_up(N, 8) if N <= 512 else 512
    Lp = _round_up(L, tq)
    Np = _round_up(N, tk)
    nq, nk = Lp // tq, Np // tk

    def _pad_rows(x, rows):
        if x.shape[1] == rows:
            return x
        return jnp.pad(x, ((0, 0), (0, rows - x.shape[1]), (0, 0)))

    Qp = _pad_rows(Q, Lp)          # head dim d is NOT padded (kept lane-exact)
    Kp = _pad_rows(K, Np)
    Vp = _pad_rows(V, Np)

    need_kv_guard = (not has_mask) and (Np != N)

    kernel = functools.partial(
        _flash_sdpa_kernel, scale=scale, n_keys=N, tk=tk, nq=nq, nk=nk,
        has_mask=has_mask, need_kv_guard=need_kv_guard)

    scratch = [
        pltpu.VMEM((tq, 1), jnp.float32),    # running max  m
        pltpu.VMEM((tq, 1), jnp.float32),    # running sum  l
        pltpu.VMEM((tq, d), jnp.float32),    # output accumulator
    ]
    q_block = (None, tq, d)
    kv_block = (None, tk, d)
    o_block = (None, tq, d)

    if has_mask:
        if mask_self_attention is not None and mask_padding is not None:
            mask = jnp.logical_or(mask_self_attention.astype(jnp.bool_),
                                  mask_padding.astype(jnp.bool_))
        elif mask_self_attention is not None:
            mask = mask_self_attention.astype(jnp.bool_)
        else:
            mask = mask_padding.astype(jnp.bool_)
        # One int8 plane (8x less HBM than two int32 planes).  Padded query
        # rows AND padded key columns are marked masked, so no in-kernel
        # key-padding guard is needed on this path.
        mask_p = jnp.pad(mask.astype(jnp.int8),
                         ((0, 0), (0, Lp - L), (0, Np - N)),
                         constant_values=1)

        # Per-(b, q-tile, kv-tile) activity table + "which kv block to fetch":
        # skipped tiles repeat the previous active block so their mask/K/V
        # DMAs are suppressed by the pipeline; leading skipped tiles point at
        # the next active block so the prefetch is useful rather than wasted.
        tiles = mask_p.reshape(B, nq, tq, nk, tk).astype(jnp.bool_)
        active = jnp.logical_not(tiles.all(axis=(2, 4)))              # (B,nq,nk)
        ids = jnp.arange(nk, dtype=jnp.int32)
        fwd = jax.lax.cummax(jnp.where(active, ids, -1), axis=2)
        bwd = jax.lax.cummin(jnp.where(active, ids, nk), axis=2, reverse=True)
        kvmap = jnp.where(fwd >= 0, fwd, jnp.minimum(bwd, nk - 1)).astype(jnp.int32)
        kvmap_flat = kvmap.reshape(-1)
        active_flat = active.astype(jnp.int32).reshape(-1)

        def _fetch(b, qi, ki, kvmap_ref):
            return kvmap_ref[(b * nq + qi) * nk + ki]

        grid_spec = pltpu.PrefetchScalarGridSpec(
            num_scalar_prefetch=2,
            grid=(B, nq, nk),
            in_specs=[
                pl.BlockSpec((None, tq, tk),
                             lambda b, qi, ki, kvm, act: (b, qi, _fetch(b, qi, ki, kvm))),
                pl.BlockSpec(q_block, lambda b, qi, ki, kvm, act: (b, qi, 0)),
                pl.BlockSpec(kv_block,
                             lambda b, qi, ki, kvm, act: (b, _fetch(b, qi, ki, kvm), 0)),
                pl.BlockSpec(kv_block,
                             lambda b, qi, ki, kvm, act: (b, _fetch(b, qi, ki, kvm), 0)),
            ],
            out_specs=pl.BlockSpec(o_block, lambda b, qi, ki, kvm, act: (b, qi, 0)),
            scratch_shapes=scratch)
        operands = (kvmap_flat, active_flat, mask_p, Qp, Kp, Vp)
    else:
        grid_spec = pltpu.PrefetchScalarGridSpec(
            num_scalar_prefetch=0,
            grid=(B, nq, nk),
            in_specs=[
                pl.BlockSpec(q_block, lambda b, qi, ki: (b, qi, 0)),
                pl.BlockSpec(kv_block, lambda b, qi, ki: (b, ki, 0)),
                pl.BlockSpec(kv_block, lambda b, qi, ki: (b, ki, 0)),
            ],
            out_specs=pl.BlockSpec(o_block, lambda b, qi, ki: (b, qi, 0)),
            scratch_shapes=scratch)
        operands = (Qp, Kp, Vp)

    out = pl.pallas_call(
        kernel,
        out_shape=jax.ShapeDtypeStruct((B, Lp, d), Q.dtype),
        grid_spec=grid_spec,
        compiler_params=pltpu.CompilerParams(
            dimension_semantics=("parallel", "parallel", "arbitrary")),
    )(*operands)

    # dropout in eval mode == identity
    # TODO(synk): training-mode dropout (stochastic masking) not implemented.
    if Lp != L:
        out = out[:, :L, :]
    return out


def _reference_sdpa(Q, K, V, msa, mpad, dk):
    scores = jnp.einsum("bld,bnd->bln", Q, K) / math.sqrt(dk)
    if msa is not None:
        scores = jnp.where(msa != 0, -jnp.inf, scores)
    if mpad is not None:
        scores = jnp.where(mpad != 0, -jnp.inf, scores)
    attn = jax.nn.softmax(scores, axis=-1)
    return jnp.einsum("bln,bnd->bld", attn, V)


if __name__ == "__main__":
    # cfg: dmodel=64, h=2  ->  dk = 32
    dmodel, h = 64, 2
    dk = dmodel // h

    # --- test 1: causal + padding masks (module's masked path) --------------
    B, L, N = 2, 8, 8
    key = jax.random.PRNGKey(0)
    kq, kk, kv = jax.random.split(key, 3)
    Q = jax.random.normal(kq, (B, L, dk), jnp.float32)
    K = jax.random.normal(kk, (B, N, dk), jnp.float32)
    V = jax.random.normal(kv, (B, N, dk), jnp.float32)
    causal = jnp.triu(jnp.ones((L, N), jnp.int32), k=1)
    mask_self = jnp.broadcast_to(causal, (B, L, N))
    mask_pad = jnp.zeros((B, L, N), jnp.int32)

    out = jax.block_until_ready(sdpa(Q, K, V, mask_self, mask_pad, dk=dk))
    ref = _reference_sdpa(Q, K, V, mask_self, mask_pad, dk)
    assert out.shape == (B, L, dk)
    assert jnp.allclose(out, ref, atol=5e-3, rtol=5e-3), "mismatch (masked)"

    # --- test 2: mask-free specialized path ----------------------------------
    out_nm = jax.block_until_ready(sdpa(Q, K, V, dk=dk))
    ref_nm = _reference_sdpa(Q, K, V, None, None, dk)
    assert jnp.allclose(out_nm, ref_nm, atol=5e-3, rtol=5e-3), "mismatch (no mask)"

    # --- test 3: mask-free ragged key length (exercises kv-padding guard) ----
    N2 = 12
    K2 = jax.random.normal(jax.random.PRNGKey(1), (B, N2, dk), jnp.float32)
    V2 = jax.random.normal(jax.random.PRNGKey(2), (B, N2, dk), jnp.float32)
    out_rg = jax.block_until_ready(sdpa(Q, K2, V2, dk=dk))
    ref_rg = _reference_sdpa(Q, K2, V2, None, None, dk)
    assert jnp.allclose(out_rg, ref_rg, atol=5e-3, rtol=5e-3), "mismatch (ragged N)"

    # --- test 4: multi-tile causal (exercises kv-tile skip + DMA suppression)
    B4, L4 = 2, 256
    k4 = jax.random.split(jax.random.PRNGKey(3), 3)
    Q4 = jax.random.normal(k4[0], (B4, L4, dk), jnp.float32)
    K4 = jax.random.normal(k4[1], (B4, L4, dk), jnp.float32)
    V4 = jax.random.normal(k4[2], (B4, L4, dk), jnp.float32)
    causal4 = jnp.broadcast_to(jnp.triu(jnp.ones((L4, L4), jnp.int32), k=1),
                               (B4, L4, L4))
    out4 = jax.block_until_ready(
        sdpa(Q4, K4, V4, causal4, None, dk=dk, tq=128, tk=128))
    ref4 = _reference_sdpa(Q4, K4, V4, causal4, None, dk)
    assert jnp.allclose(out4, ref4, atol=5e-3, rtol=5e-3), "mismatch (causal multi-tile)"

    print("KERNEL_OK")
</pallas_src>

<mosaic_0001>
module attributes {stable_mosaic.version = 11 : i64} {
  func.func @_flash_sdpa_kernel(%arg0: i32, %arg1: i32, %arg2: i32, %arg3: memref<2xi32, #tpu.memory_space<smem>>, %arg4: memref<2xi32, #tpu.memory_space<smem>>, %arg5: memref<1x32x8xi8, #tpu.memory_space<vmem>>, %arg6: memref<1x32x32xf32, #tpu.memory_space<vmem>>, %arg7: memref<1x8x32xf32, #tpu.memory_space<vmem>>, %arg8: memref<1x8x32xf32, #tpu.memory_space<vmem>>, %arg9: memref<1x32x32xf32, #tpu.memory_space<vmem>>, %arg10: memref<32x1xf32, #tpu.memory_space<vmem>>, %arg11: memref<32x1xf32, #tpu.memory_space<vmem>>, %arg12: memref<32x32xf32, #tpu.memory_space<vmem>>) attributes {dimension_semantics = [#tpu.dimension_semantics<parallel>, #tpu.dimension_semantics<parallel>, #tpu.dimension_semantics<arbitrary>], iteration_bounds = array<i64: 2, 1, 1>, scalar_prefetch = 2 : i64, scratch_operands = 3 : i64, tpu.core_type = #tpu.core_type<tc>, window_params = [{transform_indices = @transform_0, window_bounds = array<i64: 1, 32, 8>}, {transform_indices = @transform_1, window_bounds = array<i64: 1, 32, 32>}, {transform_indices = @transform_2, window_bounds = array<i64: 1, 8, 32>}, {transform_indices = @transform_3, window_bounds = array<i64: 1, 8, 32>}, {transform_indices = @transform_4, window_bounds = array<i64: 1, 32, 32>}]} {
    %c0_i32 = arith.constant 0 : i32
    %0 = arith.cmpi eq, %arg2, %c0_i32 : i32
    %1 = arith.extui %0 : i1 to i32
    %c0_i32_0 = arith.constant 0 : i32
    %2 = arith.cmpi ne, %1, %c0_i32_0 : i32
    scf.if %2 {
      %cst = arith.constant 0xFF800000 : f32
      %15 = vector.broadcast %cst : f32 to vector<32x1xf32>
      %c0 = arith.constant 0 : index
      %c0_6 = arith.constant 0 : index
      %16 = vector.load %arg10[%c0, %c0_6] : memref<32x1xf32, #tpu.memory_space<vmem>>, vector<32x1xf32>
      tpu.vector_store %arg10[%c0, %c0_6], %15 {strides = array<i32>} : memref<32x1xf32, #tpu.memory_space<vmem>>, vector<32x1xf32>,
      %cst_7 = arith.constant 0.000000e+00 : f32
      %17 = vector.broadcast %cst_7 : f32 to vector<32x1xf32>
      %c0_8 = arith.constant 0 : index
      %c0_9 = arith.constant 0 : index
      %18 = vector.load %arg11[%c0_8, %c0_9] : memref<32x1xf32, #tpu.memory_space<vmem>>, vector<32x1xf32>
      tpu.vector_store %arg11[%c0_8, %c0_9], %17 {strides = array<i32>} : memref<32x1xf32, #tpu.memory_space<vmem>>, vector<32x1xf32>,
      %cst_10 = arith.constant 0.000000e+00 : f32
      %19 = vector.broadcast %cst_10 : f32 to vector<32x32xf32>
      %c0_11 = arith.constant 0 : index
      %c0_12 = arith.constant 0 : index
      %20 = vector.load %arg12[%c0_11, %c0_12] : memref<32x32xf32, #tpu.memory_space<vmem>>, vector<32x32xf32>
      tpu.vector_store %arg12[%c0_11, %c0_12], %19 {strides = array<i32>} : memref<32x32xf32, #tpu.memory_space<vmem>>, vector<32x32xf32>,
    } else {
    }
    %c1_i32 = arith.constant 1 : i32
    %3 = arith.muli %arg0, %c1_i32 : i32
    %4 = arith.addi %3, %arg1 : i32
    %c1_i32_1 = arith.constant 1 : i32
    %5 = arith.muli %4, %c1_i32_1 : i32
    %6 = arith.addi %5, %arg2 : i32
    %7 = arith.index_cast %6 : i32 to index
    %8 = memref.load %arg4[%7] : memref<2xi32, #tpu.memory_space<smem>>
    %c0_i32_2 = arith.constant 0 : i32
    %9 = arith.cmpi ne, %8, %c0_i32_2 : i32
    %10 = arith.extui %9 : i1 to i32
    %c0_i32_3 = arith.constant 0 : i32
    %11 = arith.cmpi ne, %10, %c0_i32_3 : i32
    scf.if %11 {
      %c0 = arith.constant 0 : index
      %c0_6 = arith.constant 0 : index
      %c0_7 = arith.constant 0 : index
      %15 = vector.load %arg6[%c0, %c0_6, %c0_7] : memref<1x32x32xf32, #tpu.memory_space<vmem>>, vector<1x32x32xf32>
      %16 = vector.shape_cast %15 : vector<1x32x32xf32> to vector<32x32xf32>
      %cst = arith.constant 0.176776692 : f32
      %17 = vector.broadcast %cst : f32 to vector<32x32xf32>
      %18 = arith.mulf %16, %17 : vector<32x32xf32>
      %c0_8 = arith.constant 0 : index
      %c0_9 = arith.constant 0 : index
      %c0_10 = arith.constant 0 : index
      %19 = vector.load %arg7[%c0_8, %c0_9, %c0_10] : memref<1x8x32xf32, #tpu.memory_space<vmem>>, vector<1x8x32xf32>
      %20 = vector.shape_cast %19 : vector<1x8x32xf32> to vector<8x32xf32>
      %cst_11 = arith.constant dense<0.000000e+00> : vector<32x8xf32>
      %21 = tpu.matmul %18, %20, %cst_11 {dimension_numbers = #tpu.dot_dimension_numbers<[1], [1], [0], [0], [0, 0, 1, 0], [], []>} : vector<32x32xf32>, vector<8x32xf32>, vector<32x8xf32> -> vector<32x8xf32>
      %c0_12 = arith.constant 0 : index
      %c0_13 = arith.constant 0 : index
      %c0_14 = arith.constant 0 : index
      %22 = vector.load %arg5[%c0_12, %c0_13, %c0_14] : memref<1x32x8xi8, #tpu.memory_space<vmem>>, vector<1x32x8xi8>
      %23 = vector.shape_cast %22 : vector<1x32x8xi8> to vector<32x8xi8>
      %c0_i8 = arith.constant 0 : i8
      %24 = vector.broadcast %c0_i8 : i8 to vector<32x8xi8>
      %25 = arith.cmpi ne, %23, %24 : vector<32x8xi8>
      %cst_15 = arith.constant -1.000000e+30 : f32
      %26 = vector.broadcast %cst_15 : f32 to vector<32x8xf32>
      %27 = arith.select %25, %26, %21 : vector<32x8xi1>, vector<32x8xf32>
      %c0_16 = arith.constant 0 : index
      %c0_17 = arith.constant 0 : index
      %28 = vector.load %arg10[%c0_16, %c0_17] : memref<32x1xf32, #tpu.memory_space<vmem>>, vector<32x1xf32>
      %cst_18 = arith.constant dense<0xFF800000> : vector<32xf32>
      %29 = vector.multi_reduction <maximumf>, %27, %cst_18 [1] : vector<32x8xf32> to vector<32xf32>
      %30 = vector.shape_cast %29 : vector<32xf32> to vector<32x1xf32>
      %31 = arith.maximumf %28, %30 : vector<32x1xf32>
      %32 = arith.subf %28, %31 : vector<32x1xf32>
      %33 = math.exp %32 : vector<32x1xf32>
      %34 = vector.broadcast %31 : vector<32x1xf32> to vector<32x8xf32>
      %35 = arith.subf %27, %34 : vector<32x8xf32>
      %36 = math.exp %35 : vector<32x8xf32>
      %c0_19 = arith.constant 0 : index
      %c0_20 = arith.constant 0 : index
      %37 = vector.load %arg11[%c0_19, %c0_20] : memref<32x1xf32, #tpu.memory_space<vmem>>, vector<32x1xf32>
      %38 = arith.mulf %33, %37 : vector<32x1xf32>
      %cst_21 = arith.constant dense<0.000000e+00> : vector<32xf32>
      %39 = vector.multi_reduction <add>, %36, %cst_21 [1] : vector<32x8xf32> to vector<32xf32>
      %40 = vector.shape_cast %39 : vector<32xf32> to vector<32x1xf32>
      %41 = arith.addf %38, %40 : vector<32x1xf32>
      %c0_22 = arith.constant 0 : index
      %c0_23 = arith.constant 0 : index
      %42 = vector.load %arg11[%c0_22, %c0_23] : memref<32x1xf32, #tpu.memory_space<vmem>>, vector<32x1xf32>
      tpu.vector_store %arg11[%c0_22, %c0_23], %41 {strides = array<i32>} : memref<32x1xf32, #tpu.memory_space<vmem>>, vector<32x1xf32>,
      %c0_24 = arith.constant 0 : index
      %c0_25 = arith.constant 0 : index
      %43 = vector.load %arg12[%c0_24, %c0_25] : memref<32x32xf32, #tpu.memory_space<vmem>>, vector<32x32xf32>
      %44 = vector.broadcast %33 : vector<32x1xf32> to vector<32x32xf32>
      %45 = arith.mulf %44, %43 : vector<32x32xf32>
      %c0_26 = arith.constant 0 : index
      %c0_27 = arith.constant 0 : index
      %c0_28 = arith.constant 0 : index
      %46 = vector.load %arg8[%c0_26, %c0_27, %c0_28] : memref<1x8x32xf32, #tpu.memory_space<vmem>>, vector<1x8x32xf32>
      %47 = vector.shape_cast %46 : vector<1x8x32xf32> to vector<8x32xf32>
      %cst_29 = arith.constant dense<0.000000e+00> : vector<32x32xf32>
      %48 = tpu.matmul %36, %47, %cst_29 {dimension_numbers = #tpu.dot_dimension_numbers<[1], [0], [0], [1], [0, 0, 1, 1], [], []>} : vector<32x8xf32>, vector<8x32xf32>, vector<32x32xf32> -> vector<32x32xf32>
      %49 = arith.addf %45, %48 : vector<32x32xf32>
      %c0_30 = arith.constant 0 : index
      %c0_31 = arith.constant 0 : index
      %50 = vector.load %arg12[%c0_30, %c0_31] : memref<32x32xf32, #tpu.memory_space<vmem>>, vector<32x32xf32>
      tpu.vector_store %arg12[%c0_30, %c0_31], %49 {strides = array<i32>} : memref<32x32xf32, #tpu.memory_space<vmem>>, vector<32x32xf32>,
      %c0_32 = arith.constant 0 : index
      %c0_33 = arith.constant 0 : index
      %51 = vector.load %arg10[%c0_32, %c0_33] : memref<32x1xf32, #tpu.memory_space<vmem>>, vector<32x1xf32>
      tpu.vector_store %arg10[%c0_32, %c0_33], %31 {strides = array<i32>} : memref<32x1xf32, #tpu.memory_space<vmem>>, vector<32x1xf32>,
    } else {
    }
    %c0_i32_4 = arith.constant 0 : i32
    %12 = arith.cmpi eq, %arg2, %c0_i32_4 : i32
    %13 = arith.extui %12 : i1 to i32
    %c0_i32_5 = arith.constant 0 : i32
    %14 = arith.cmpi ne, %13, %c0_i32_5 : i32
    scf.if %14 {
      %c0 = arith.constant 0 : index
      %c0_6 = arith.constant 0 : index
      %15 = vector.load %arg11[%c0, %c0_6] : memref<32x1xf32, #tpu.memory_space<vmem>>, vector<32x1xf32>
      %cst = arith.constant 0.000000e+00 : f32
      %16 = vector.broadcast %cst : f32 to vector<32x1xf32>
      %17 = arith.cmpf oeq, %15, %16 : vector<32x1xf32>
      %cst_7 = arith.constant 1.000000e+00 : f32
      %18 = vector.broadcast %cst_7 : f32 to vector<32x1xf32>
      %19 = arith.select %17, %18, %15 : vector<32x1xi1>, vector<32x1xf32>
      %20 = tpu.reciprocal %19 {approx = true} : vector<32x1xf32> -> vector<32x1xf32>
      %c0_8 = arith.constant 0 : index
      %c0_9 = arith.constant 0 : index
      %21 = vector.load %arg12[%c0_8, %c0_9] : memref<32x32xf32, #tpu.memory_space<vmem>>, vector<32x32xf32>
      %22 = vector.broadcast %20 : vector<32x1xf32> to vector<32x32xf32>
      %23 = arith.mulf %21, %22 : vector<32x32xf32>
      %c0_10 = arith.constant 0 : index
      %c0_11 = arith.constant 0 : index
      %c0_12 = arith.constant 0 : index
      %24 = vector.load %arg9[%c0_10, %c0_11, %c0_12] : memref<1x32x32xf32, #tpu.memory_space<vmem>>, vector<1x32x32xf32>
      %25 = vector.shape_cast %24 : vector<1x32x32xf32> to vector<32x32xf32>
      %26 = vector.shape_cast %23 : vector<32x32xf32> to vector<1x32x32xf32>
      tpu.vector_store %arg9[%c0_10, %c0_11, %c0_12], %26 {strides = array<i32>} : memref<1x32x32xf32, #tpu.memory_space<vmem>>, vector<1x32x32xf32>,
    } else {
    }
    return
  }
  func.func @transform_0(%arg0: i32, %arg1: i32, %arg2: i32, %arg3: memref<2xi32, #tpu.memory_space<smem>>, %arg4: memref<2xi32, #tpu.memory_space<smem>>) -> (i32, i32, i32) {
    %c1_i32 = arith.constant 1 : i32
    %0 = arith.muli %arg0, %c1_i32 : i32
    %1 = arith.addi %0, %arg1 : i32
    %c1_i32_0 = arith.constant 1 : i32
    %2 = arith.muli %1, %c1_i32_0 : i32
    %3 = arith.addi %2, %arg2 : i32
    %4 = arith.index_cast %3 : i32 to index
    %5 = memref.load %arg3[%4] : memref<2xi32, #tpu.memory_space<smem>>
    %c0_i32 = arith.constant 0 : i32
    return %arg0, %arg1, %5 : i32, i32, i32
  }
  func.func @transform_1(%arg0: i32, %arg1: i32, %arg2: i32, %arg3: memref<2xi32, #tpu.memory_space<smem>>, %arg4: memref<2xi32, #tpu.memory_space<smem>>) -> (i32, i32, i32) {
    %c0_i32 = arith.constant 0 : i32
    %c0_i32_0 = arith.constant 0 : i32
    return %arg0, %arg1, %c0_i32 : i32, i32, i32
  }
  func.func @transform_2(%arg0: i32, %arg1: i32, %arg2: i32, %arg3: memref<2xi32, #tpu.memory_space<smem>>, %arg4: memref<2xi32, #tpu.memory_space<smem>>) -> (i32, i32, i32) {
    %c1_i32 = arith.constant 1 : i32
    %0 = arith.muli %arg0, %c1_i32 : i32
    %1 = arith.addi %0, %arg1 : i32
    %c1_i32_0 = arith.constant 1 : i32
    %2 = arith.muli %1, %c1_i32_0 : i32
    %3 = arith.addi %2, %arg2 : i32
    %4 = arith.index_cast %3 : i32 to index
    %5 = memref.load %arg3[%4] : memref<2xi32, #tpu.memory_space<smem>>
    %c0_i32 = arith.constant 0 : i32
    %c0_i32_1 = arith.constant 0 : i32
    return %arg0, %5, %c0_i32 : i32, i32, i32
  }
  func.func @transform_3(%arg0: i32, %arg1: i32, %arg2: i32, %arg3: memref<2xi32, #tpu.memory_space<smem>>, %arg4: memref<2xi32, #tpu.memory_space<smem>>) -> (i32, i32, i32) {
    %c1_i32 = arith.constant 1 : i32
    %0 = arith.muli %arg0, %c1_i32 : i32
    %1 = arith.addi %0, %arg1 : i32
    %c1_i32_0 = arith.constant 1 : i32
    %2 = arith.muli %1, %c1_i32_0 : i32
    %3 = arith.addi %2, %arg2 : i32
    %4 = arith.index_cast %3 : i32 to index
    %5 = memref.load %arg3[%4] : memref<2xi32, #tpu.memory_space<smem>>
    %c0_i32 = arith.constant 0 : i32
    %c0_i32_1 = arith.constant 0 : i32
    return %arg0, %5, %c0_i32 : i32, i32, i32
  }
  func.func @transform_4(%arg0: i32, %arg1: i32, %arg2: i32, %arg3: memref<2xi32, #tpu.memory_space<smem>>, %arg4: memref<2xi32, #tpu.memory_space<smem>>) -> (i32, i32, i32) {
    %c0_i32 = arith.constant 0 : i32
    %c0_i32_0 = arith.constant 0 : i32
    return %arg0, %arg1, %c0_i32 : i32, i32, i32
  }
}

</mosaic_0001>

<llo_original>
// kernel: tpu_custom_call.1
$region0: #{tpu_custom_call.1}
  #allocation0 [shape = 'u32[]', space=smem, size = 0x4, offset = 0x4, fixed_abs, tag = 'smem constant byte address 0x4 - core index']
  #allocation1 [shape = 'u32[144,128]{1,0:T(1,128)}', space=vmem, size = 0x12000, scoped, tag = 'internal scratch']
  #allocation2 [shape = 'f32[32,1]{1,0:T(8,128)}', space=vmem, size = 0x4000, scoped, tag = 'scratch operand']
  #allocation3 [shape = 'f32[32,1]{1,0:T(8,128)}', space=vmem, size = 0x4000, scoped, tag = 'scratch operand']
  #allocation4 [shape = 'f32[32,32]{1,0:T(8,128)}', space=vmem, size = 0x4000, scoped, tag = 'scratch operand']
  #allocation5 [shape = 's32[1]{0}', space=sflag, size = 0x4, scoped, tag = 'scoped memory for tpu_custom_call.1']
  #allocation6 [shape = 'u8[512]{0}', space=smem, size = 0x200, scoped, tag = 'prefetched SMEM operand 0']
  #allocation7 [shape = 'u8[512]{0}', space=smem, size = 0x200, scoped, tag = 'prefetched SMEM operand 1']
  %s0 = inlined_call_operand.vmem [shape: s32[2], index: 0, kind: input, shape index: {}]
  %s1 = inlined_call_operand.vmem [shape: s32[2], index: 1, kind: input, shape index: {}]
  %s2 = inlined_call_operand.vmem [shape: s8[2,32,8], index: 2, kind: input, shape index: {}]
  %s3 = inlined_call_operand.hbm [shape: f32[2,32,32], index: 3, kind: input, shape index: {}]
  %s4 = inlined_call_operand.vmem [shape: f32[2,8,32], index: 4, kind: input, shape index: {}]
  %s5 = inlined_call_operand.vmem [shape: f32[2,8,32], index: 5, kind: input, shape index: {}]
  %s6 = inlined_call_operand.hbm [shape: f32[2,32,32], index: 6, kind: output, shape index: {}]
  %s7 = sld [smem:[#allocation0]]
  $region65: #{tpu_custom_call.1} parent=0
    _
  %s9 = ssub.s32 1, %s7
  %s10 = scalar_select 0, %s9, %s7
  %s11 = sshll.u32 %s0, 4
  %s12 = int_to_ptr.vmem [resolvable:$true] %s11
  %14 = dma.vmem_to_smem %s12, 16, [#allocation6], [#allocation5]
  %s15 = sshll.u32 %s1, 4
  %s16 = int_to_ptr.vmem [resolvable:$true] %s15
  %18 = dma.vmem_to_smem %s16, 16, [#allocation7], [#allocation5]
  %19 = dma.done [#allocation5], 32
  %20 = sfence
  $region1: #{tpu_custom_call.1} parent=0
    #allocation8 [shape = 'u8[32768]{0}', space=vmem, size = 0x8000, scoped, tag = 'input window, operand 3']
    #allocation9 [shape = 's32[2]{0}', space=sflag, size = 0x8, scoped, tag = 'scoped memory for tpu_custom_call.1']
    #allocation10 [shape = 's32[2]{0}', space=sflag, size = 0x8, scoped, tag = 'scoped memory for tpu_custom_call.1']
    #allocation11 [shape = 'u8[32768]{0}', space=vmem, size = 0x8000, scoped, tag = 'output window, operand 0']
    %21 = vsyncpa [#allocation9], 0
    %s22 = scalar_lea.sflag [#allocation9], 1
    %23 = vsyncpa %s22, 0
    %24 = vsyncpa [#allocation10], 0
    %s25 = scalar_lea.sflag [#allocation10], 1
    %26 = vsyncpa %s25, 0
    loop: start=0, step=1, limit=4
    $region2: #{tpu_custom_call.1} parent=1 // loop_pre_header
      _
    $region3: #{tpu_custom_call.1} parent=1 // loop_header
      %s28 = sphi 0, %s32
      %p29 = scmp.ge.s32.totalorder %s28, 4
      %s35 = sphi 0, %s54
      %s36 = sphi 0, %s50
      %s37 = sphi 0, %s46
      %s38 = sphi 0, %s35
      %s39 = sphi 0, %s36
      %s40 = sphi 0, %s37
      %s41 = sphi 0, %s38
      %s42 = sphi 0, %s39
      %s43 = sphi 0, %s40
      %s67 = sphi 0, %s69
      %s70 = sphi 0, %s67
      %s71 = sphi 0, %s70
      %s87 = sphi 0, %s71
      %s95 = sphi 0, %s97
      %s98 = sphi 0, %s95
      %s99 = sphi 0, %s98
      %s115 = sphi 0, %s99
      %s129 = sphi 0, %s131
      %s132 = sphi 0, %s129
      %s133 = sphi 0, %s132
      %s149 = sphi 0, %s133
      %s163 = sphi 0, %s165
      %s166 = sphi 0, %s163
      %s167 = sphi 0, %s166
      %s183 = sphi 0, %s167
      %s191 = sphi 0, %s193
      %s194 = sphi 0, %s191
      %s195 = sphi 0, %s194
      %s211 = sphi 0, %s195
    $region4: #{tpu_custom_call.1} parent=1 // loop_header_branch
      %31 = sbr.rel (%p29) target = $region8
    $region5: #{tpu_custom_call.1} parent=1 // loop_body
      %s33 = ssub.s32 %s28, 1
      %s34 = ssub.s32 %s28, 2
      %s44 = sadd.s32 1, %s37
      %p45 = scmp.ge.s32.totalorder %s44, 1
      %s46 = scalar_select %p45, 0, %s44
      %s47 = sadd.s32 1, %s36
      %s48 = scalar_select %p45, %s47, %s36
      %p49 = scmp.ge.s32.totalorder %s48, 1
      %s50 = scalar_select %p49, 0, %s48
      %s51 = sadd.s32 1, %s35
      %s52 = scalar_select %p49, %s51, %s35
      %p53 = scmp.ge.s32.totalorder %s52, 2
      %s54 = scalar_select %p53, 0, %s52
      %s55 = sadd.s32 %s35, %s36
      %s56 = sadd.s32 %s55, %s37
      %s57 = sld [smem:[#allocation6 + %s56]]
      %s58 = sadd.s32 %s54, %s50
      %s59 = sadd.s32 %s58, %s46
      %s60 = sld [smem:[#allocation6 + %s59]]
      %s61 = ssub.s32 %s35, %s54
      %s62 = ssub.s32 %s36, %s50
      %s63 = sor.u32 %s61, %s62
      %s64 = ssub.s32 %s57, %s60
      %s65 = sor.u32 %s63, %s64
      %p66 = scmp.eq.s32.totalorder %s65, 0
      %s68 = sadd.s32 %s67, 1
      %s69 = scalar_select %p66, %s67, %s68
      %p72 = pneg %p66
      %p73 = scmp.eq.s32.totalorder %s28, 1
      %p74 = por %p72, %p73
      %p75 = scmp.ne.s32.totalorder %s67, %s70
      %p76 = scmp.eq.s32.totalorder %s28, 0
      %p77 = por %p75, %p76
      %p78 = scmp.ne.s32.totalorder %s67, %s70
      %p79 = scmp.eq.s32.totalorder %s33, 1
      %p80 = por %p78, %p79
      %p81 = scmp.ne.s32.totalorder %s70, %s71
      %p82 = scmp.eq.s32.totalorder %s33, 0
      %p83 = por %p81, %p82
      %p84 = scmp.ne.s32.totalorder %s70, %s71
      %p85 = scmp.eq.s32.totalorder %s34, 1
      %p86 = por %p84, %p85
      %p88 = scmp.ne.s32.totalorder %s71, %s87
      %p89 = scmp.eq.s32.totalorder %s34, 0
      %p90 = por %p88, %p89
      %s91 = ssub.s32 %s35, %s54
      %s92 = ssub.s32 %s36, %s50
      %s93 = sor.u32 %s91, %s92
      %p94 = scmp.eq.s32.totalorder %s93, 0
      %s96 = sadd.s32 %s95, 1
      %s97 = scalar_select %p94, %s95, %s96
      %p100 = pneg %p94
      %p101 = scmp.eq.s32.totalorder %s28, 1
      %p102 = por %p100, %p101
      %p103 = scmp.ne.s32.totalorder %s95, %s98
      %p104 = scmp.eq.s32.totalorder %s28, 0
      %p105 = por %p103, %p104
      %p106 = scmp.ne.s32.totalorder %s95, %s98
      %p107 = scmp.eq.s32.totalorder %s33, 1
      %p108 = por %p106, %p107
      %p109 = scmp.ne.s32.totalorder %s98, %s99
      %p110 = scmp.eq.s32.totalorder %s33, 0
      %p111 = por %p109, %p110
      %p112 = scmp.ne.s32.totalorder %s98, %s99
      %p113 = scmp.eq.s32.totalorder %s34, 1
      %p114 = por %p112, %p113
      %p116 = scmp.ne.s32.totalorder %s99, %s115
      %p117 = scmp.eq.s32.totalorder %s34, 0
      %p118 = por %p116, %p117
      %s119 = sadd.s32 %s35, %s36
      %s120 = sadd.s32 %s119, %s37
      %s121 = sld [smem:[#allocation6 + %s120]]
      %s122 = sadd.s32 %s54, %s50
      %s123 = sadd.s32 %s122, %s46
      %s124 = sld [smem:[#allocation6 + %s123]]
      %s125 = ssub.s32 %s35, %s54
      %s126 = ssub.s32 %s121, %s124
      %s127 = sor.u32 %s125, %s126
      %p128 = scmp.eq.s32.totalorder %s127, 0
      %s130 = sadd.s32 %s129, 1
      %s131 = scalar_select %p128, %s129, %s130
      %p134 = pneg %p128
      %p135 = scmp.eq.s32.totalorder %s28, 1
      %p136 = por %p134, %p135
      %p137 = scmp.ne.s32.totalorder %s129, %s132
      %p138 = scmp.eq.s32.totalorder %s28, 0
      %p139 = por %p137, %p138
      %p140 = scmp.ne.s32.totalorder %s129, %s132
      %p141 = scmp.eq.s32.totalorder %s33, 1
      %p142 = por %p140, %p141
      %p143 = scmp.ne.s32.totalorder %s132, %s133
      %p144 = scmp.eq.s32.totalorder %s33, 0
      %p145 = por %p143, %p144
      %p146 = scmp.ne.s32.totalorder %s132, %s133
      %p147 = scmp.eq.s32.totalorder %s34, 1
      %p148 = por %p146, %p147
      %p150 = scmp.ne.s32.totalorder %s133, %s149
      %p151 = scmp.eq.s32.totalorder %s34, 0
      %p152 = por %p150, %p151
      %s153 = sadd.s32 %s35, %s36
      %s154 = sadd.s32 %s153, %s37
      %s155 = sld [smem:[#allocation6 + %s154]]
      %s156 = sadd.s32 %s54, %s50
      %s157 = sadd.s32 %s156, %s46
      %s158 = sld [smem:[#allocation6 + %s157]]
      %s159 = ssub.s32 %s35, %s54
      %s160 = ssub.s32 %s155, %s158
      %s161 = sor.u32 %s159, %s160
      %p162 = scmp.eq.s32.totalorder %s161, 0
      %s164 = sadd.s32 %s163, 1
      %s165 = scalar_select %p162, %s163, %s164
      %p168 = pneg %p162
      %p169 = scmp.eq.s32.totalorder %s28, 1
      %p170 = por %p168, %p169
      %p171 = scmp.ne.s32.totalorder %s163, %s166
      %p172 = scmp.eq.s32.totalorder %s28, 0
      %p173 = por %p171, %p172
      %p174 = scmp.ne.s32.totalorder %s163, %s166
      %p175 = scmp.eq.s32.totalorder %s33, 1
      %p176 = por %p174, %p175
      %p177 = scmp.ne.s32.totalorder %s166, %s167
      %p178 = scmp.eq.s32.totalorder %s33, 0
      %p179 = por %p177, %p178
      %p180 = scmp.ne.s32.totalorder %s166, %s167
      %p181 = scmp.eq.s32.totalorder %s34, 1
      %p182 = por %p180, %p181
      %p184 = scmp.ne.s32.totalorder %s167, %s183
      %p185 = scmp.eq.s32.totalorder %s34, 0
      %p186 = por %p184, %p185
      %s187 = ssub.s32 %s35, %s54
      %s188 = ssub.s32 %s36, %s50
      %s189 = sor.u32 %s187, %s188
      %p190 = scmp.eq.s32.totalorder %s189, 0
      %s192 = sadd.s32 %s191, 1
      %s193 = scalar_select %p190, %s191, %s192
      %p196 = pneg %p190
      %p197 = scmp.eq.s32.totalorder %s28, 1
      %p198 = por %p196, %p197
      %p199 = scmp.ne.s32.totalorder %s191, %s194
      %p200 = scmp.eq.s32.totalorder %s28, 0
      %p201 = por %p199, %p200
      %p202 = scmp.ne.s32.totalorder %s191, %s194
      %p203 = scmp.eq.s32.totalorder %s33, 1
      %p204 = por %p202, %p203
      %p205 = scmp.ne.s32.totalorder %s194, %s195
      %p206 = scmp.eq.s32.totalorder %s33, 0
      %p207 = por %p205, %p206
      %p208 = scmp.ne.s32.totalorder %s194, %s195
      %p209 = scmp.eq.s32.totalorder %s34, 1
      %p210 = por %p208, %p209
      %p212 = scmp.ne.s32.totalorder %s195, %s211
      %p213 = scmp.eq.s32.totalorder %s34, 0
      %p214 = por %p212, %p213
      %p215 = scmp.le.s32.totalorder 1, %s28
      %p216 = scmp.lt.s32.totalorder %s28, 3
      %p217 = pnand %p215, %p216
      %p218 = pneg %p217
      // Predicated region
      $region9: #{tpu_custom_call.1} parent=5 // pred_check
        _
      $region10: #{tpu_custom_call.1} parent=5 // pred_check_branch
        %220 = sbr.rel (%p217) target = $region12
      $region11: #{tpu_custom_call.1} parent=5 // pred_region
        %s221 = ssub.s32 %s28, 1
      $region12: #{tpu_custom_call.1} parent=5 // pred_fallthru
        _
      %p222 = scmp.lt.s32.totalorder %s28, 2
      // Predicated region
      $region13: #{tpu_custom_call.1} parent=5 // pred_check
        %p223 = pneg %p222
      $region14: #{tpu_custom_call.1} parent=5 // pred_check_branch
        %225 = sbr.rel (%p223) target = $region16
      $region15: #{tpu_custom_call.1} parent=5 // pred_region
        // Predicated region
        $region17: #{tpu_custom_call.1} parent=15 // pred_check
          %p226 = pneg %p77
        $region18: #{tpu_custom_call.1} parent=15 // pred_check_branch
          %228 = sbr.rel (%p226) target = $region20
        $region19: #{tpu_custom_call.1} parent=15 // pred_region
          %s229 = sadd.s32 %s35, %s36
          %s230 = sadd.s32 %s229, %s37
          %s231 = sld [smem:[#allocation6 + %s230]]
          %s232 = smul.u32 4, %s36
          %p233 = scmp.lt.s32.totalorder %s35, 1
          %s234 = scalar_select %p233, %s35, 1
          %p235 = scmp.lt.s32.totalorder %s232, 3
          %s236 = scalar_select %p235, %s232, 3
          %p237 = scmp.lt.s32.totalorder %s231, 0
          %s238 = scalar_select %p237, %s231, 0
          %s239 = sadd.s32 %s238, %s236
          %s240 = smul.addr %s234, 4
          %s241 = sadd.s32 %s239, %s240
          %s242 = smul.addr %s241, 2
          %s243 = scalar_lea.vmem %s2, %s242
          %s244 = sadd.s32 %s35, %s36
          %s245 = sadd.s32 %s244, %s37
          %s246 = sld [smem:[#allocation6 + %s245]]
          %s247 = smul.u32 4, %s36
        $region20: #{tpu_custom_call.1} parent=15 // pred_fallthru
          _
        // Predicated region
        $region21: #{tpu_custom_call.1} parent=15 // pred_check
          %p248 = pneg %p105
        $region22: #{tpu_custom_call.1} parent=15 // pred_check_branch
          %250 = sbr.rel (%p248) target = $region24
        $region23: #{tpu_custom_call.1} parent=15 // pred_region
          %s251 = sand.u32 %s95, 1
          %s252 = scalar_lea.sflag [#allocation9], %s251
          %s253 = sand.u32 %s95, 1
          %s254 = smul.addr %s253, 32
          %s255 = scalar_lea.vmem [#allocation8], %s254
          %s256 = smul.u32 4, %s36
          %s258 = ssub.s32 512, 512
          %259 = vsyncadd %s252, %s258
          %s260 = smul.addr %s35, 4
          %s261 = sadd.s32 %s256, %s260
          %s262 = smul.addr %s261, 128
          %s263 = scalar_lea.hbm %s3, %s262
          %s264 = sshll.u32 %s255, 4
          %s265 = int_to_ptr.vmem [resolvable:$true] %s264
          %270 = dma.hbm_to_vmem [thread:$0]  %s263, 512, %s265, %s252, 128, 128, 8
        $region24: #{tpu_custom_call.1} parent=15 // pred_fallthru
          _
        // Predicated region
        $region25: #{tpu_custom_call.1} parent=15 // pred_check
          %p271 = pneg %p139
        $region26: #{tpu_custom_call.1} parent=15 // pred_check_branch
          %273 = sbr.rel (%p271) target = $region28
        $region27: #{tpu_custom_call.1} parent=15 // pred_region
          %s274 = sadd.s32 %s35, %s36
          %s275 = sadd.s32 %s274, %s37
          %s276 = sld [smem:[#allocation6 + %s275]]
          %p277 = scmp.lt.s32.totalorder %s35, 1
          %s278 = scalar_select %p277, %s35, 1
          %p279 = scmp.lt.s32.totalorder %s276, 0
          %s280 = scalar_select %p279, %s276, 0
          %s281 = sadd.s32 %s280, %s278
          %s282 = smul.addr %s281, 8
          %s283 = scalar_lea.vmem %s4, %s282
          %s284 = sadd.s32 %s35, %s36
          %s285 = sadd.s32 %s284, %s37
          %s286 = sld [smem:[#allocation6 + %s285]]
        $region28: #{tpu_custom_call.1} parent=15 // pred_fallthru
          _
        // Predicated region
        $region29: #{tpu_custom_call.1} parent=15 // pred_check
          %p287 = pneg %p173
        $region30: #{tpu_custom_call.1} parent=15 // pred_check_branch
          %289 = sbr.rel (%p287) target = $region32
        $region31: #{tpu_custom_call.1} parent=15 // pred_region
          %s290 = sadd.s32 %s35, %s36
          %s291 = sadd.s32 %s290, %s37
          %s292 = sld [smem:[#allocation6 + %s291]]
          %p293 = scmp.lt.s32.totalorder %s35, 1
          %s294 = scalar_select %p293, %s35, 1
          %p295 = scmp.lt.s32.totalorder %s292, 0
          %s296 = scalar_select %p295, %s292, 0
          %s297 = sadd.s32 %s296, %s294
          %s298 = smul.addr %s297, 8
          %s299 = scalar_lea.vmem %s5, %s298
          %s300 = sadd.s32 %s35, %s36
          %s301 = sadd.s32 %s300, %s37
          %s302 = sld [smem:[#allocation6 + %s301]]
        $region32: #{tpu_custom_call.1} parent=15 // pred_fallthru
          _
      $region16: #{tpu_custom_call.1} parent=5 // pred_fallthru
        _
      %p303 = scmp.le.s32.totalorder 1, %s28
      %p304 = scmp.lt.s32.totalorder %s28, 3
      %p305 = pnand %p303, %p304
      %p306 = pneg %p305
      // Predicated region
      $region33: #{tpu_custom_call.1} parent=5 // pred_check
        _
      $region34: #{tpu_custom_call.1} parent=5 // pred_check_branch
        %308 = sbr.rel (%p305) target = $region36
      $region35: #{tpu_custom_call.1} parent=5 // pred_region
        %s309 = ssub.s32 %s28, 1
        %s310 = sand.u32 %s98, 1
        %s311 = scalar_lea.sflag [#allocation9], %s310
        %s312 = sand.u32 %s98, 1
        %s313 = smul.addr %s312, 32
        %s314 = scalar_lea.vmem [#allocation8], %s313
        // Predicated region
        $region37: #{tpu_custom_call.1} parent=35 // pred_check
          %p315 = pneg %p111
        $region38: #{tpu_custom_call.1} parent=35 // pred_check_branch
          %317 = sbr.rel (%p315) target = $region40
        $region39: #{tpu_custom_call.1} parent=35 // pred_region
          %318 = dma.done %s311, 512
        $region40: #{tpu_custom_call.1} parent=35 // pred_fallthru
          _
        %s319 = sadd.s32 %s38, %s39
        %s320 = sadd.s32 %s319, %s40
        %s321 = sld [smem:[#allocation6 + %s320]]
        %s322 = smul.u32 4, %s39
        %p323 = scmp.lt.s32.totalorder %s38, 1
        %s324 = scalar_select %p323, %s38, 1
        %p325 = scmp.lt.s32.totalorder %s322, 3
        %s326 = scalar_select %p325, %s322, 3
        %p327 = scmp.lt.s32.totalorder %s321, 0
        %s328 = scalar_select %p327, %s321, 0
        %s329 = sadd.s32 %s328, %s326
        %s330 = smul.addr %s324, 4
        %s331 = sadd.s32 %s329, %s330
        %s332 = smul.addr %s331, 2
        %s333 = scalar_lea.vmem %s2, %s332
        %p334 = pneg %p83
        %p335 = pneg %p80
        %s336 = sand.u32 %s98, 1
        %s337 = scalar_lea.sflag [#allocation9], %s336
        %s338 = sand.u32 %s98, 1
        %s339 = smul.addr %s338, 32
        %s340 = scalar_lea.vmem [#allocation8], %s339
        %p341 = pneg %p111
        %p342 = pneg %p108
        %s343 = sadd.s32 %s38, %s39
        %s344 = sadd.s32 %s343, %s40
        %s345 = sld [smem:[#allocation6 + %s344]]
        %p346 = scmp.lt.s32.totalorder %s38, 1
        %s347 = scalar_select %p346, %s38, 1
        %p348 = scmp.lt.s32.totalorder %s345, 0
        %s349 = scalar_select %p348, %s345, 0
        %s350 = sadd.s32 %s349, %s347
        %s351 = smul.addr %s350, 8
        %s352 = scalar_lea.vmem %s4, %s351
        %p353 = pneg %p145
        %p354 = pneg %p142
        %s355 = sadd.s32 %s38, %s39
        %s356 = sadd.s32 %s355, %s40
        %s357 = sld [smem:[#allocation6 + %s356]]
        %p358 = scmp.lt.s32.totalorder %s38, 1
        %s359 = scalar_select %p358, %s38, 1
        %p360 = scmp.lt.s32.totalorder %s357, 0
        %s361 = scalar_select %p360, %s357, 0
        %s362 = sadd.s32 %s361, %s359
        %s363 = smul.addr %s362, 8
        %s364 = scalar_lea.vmem %s5, %s363
        %p365 = pneg %p179
        %p366 = pneg %p176
        %p367 = pneg %p207
        %p368 = pneg %p204
        %s369 = sand.u32 %s194, 1
        %s370 = scalar_lea.sflag [#allocation10], %s369
        %s371 = sand.u32 %s194, 1
        %s372 = smul.addr %s371, 32
        %s373 = scalar_lea.vmem [#allocation11], %s372
        %s374 = sadd.s32 %s38, %s39
        %s375 = sadd.s32 %s374, %s40
        %s376 = sld [smem:[#allocation6 + %s375]]
        %s377 = smul.u32 4, %s39
        %p378 = scmp.lt.s32.totalorder %s38, 1
        %s379 = scalar_select %p378, %s38, 1
        %p380 = scmp.lt.s32.totalorder %s377, 3
        %s381 = scalar_select %p380, %s377, 3
        %p382 = scmp.lt.s32.totalorder %s376, 0
        %s383 = scalar_select %p382, %s376, 0
        %s384 = sadd.s32 %s383, %s381
        %s385 = smul.addr %s379, 4
        %s386 = sadd.s32 %s384, %s385
        %s387 = smul.addr %s386, 2
        %s388 = scalar_lea.vmem %s2, %s387
        %s389 = sadd.s32 %s38, %s39
        %s390 = sadd.s32 %s389, %s40
        %s391 = sld [smem:[#allocation6 + %s390]]
        %s392 = smul.u32 4, %s39
        %s393 = smul.u32 4, %s39
        %s394 = sadd.s32 %s38, %s39
        %s395 = sadd.s32 %s394, %s40
        %s396 = sld [smem:[#allocation6 + %s395]]
        %p397 = scmp.lt.s32.totalorder %s38, 1
        %s398 = scalar_select %p397, %s38, 1
        %p399 = scmp.lt.s32.totalorder %s396, 0
        %s400 = scalar_select %p399, %s396, 0
        %s401 = sadd.s32 %s400, %s398
        %s402 = smul.addr %s401, 8
        %s403 = scalar_lea.vmem %s4, %s402
        %s404 = sadd.s32 %s38, %s39
        %s405 = sadd.s32 %s404, %s40
        %s406 = sld [smem:[#allocation6 + %s405]]
        %s407 = sadd.s32 %s38, %s39
        %s408 = sadd.s32 %s407, %s40
        %s409 = sld [smem:[#allocation6 + %s408]]
        %p410 = scmp.lt.s32.totalorder %s38, 1
        %s411 = scalar_select %p410, %s38, 1
        %p412 = scmp.lt.s32.totalorder %s409, 0
        %s413 = scalar_select %p412, %s409, 0
        %s414 = sadd.s32 %s413, %s411
        %s415 = smul.addr %s414, 8
        %s416 = scalar_lea.vmem %s5, %s415
        %s417 = sadd.s32 %s38, %s39
        %s418 = sadd.s32 %s417, %s40
        %s419 = sld [smem:[#allocation6 + %s418]]
        %s420 = smul.u32 4, %s39
        %p423 = scmp.eq.s32.totalorder %s40, 0
        // Predicated region
        $region41: #{tpu_custom_call.1} parent=35 // pred_check
          %p424 = pneg %p423
        $region42: #{tpu_custom_call.1} parent=35 // pred_check_branch
          %426 = sbr.rel (%p424) target = $region44
        $region43: #{tpu_custom_call.1} parent=35 // pred_region
          %vm427 = vcmask 7168
          %428 = vst.msk [vmem:[#allocation2] sm:$0xff] %vm427, -inf
          %429 = vst.msk [vmem:[#allocation2 + $0x8] sm:$0xff] %vm427, -inf
          %430 = vst.msk [vmem:[#allocation2 + $0x10] sm:$0xff] %vm427, -inf
          %431 = vst.msk [vmem:[#allocation2 + $0x18] sm:$0xff] %vm427, -inf
          %432 = vst.msk [vmem:[#allocation3] sm:$0xff] %vm427, 0.0
          %433 = vst.msk [vmem:[#allocation3 + $0x8] sm:$0xff] %vm427, 0.0
          %434 = vst.msk [vmem:[#allocation3 + $0x10] sm:$0xff] %vm427, 0.0
          %435 = vst.msk [vmem:[#allocation3 + $0x18] sm:$0xff] %vm427, 0.0
          %vm436 = vcmask 261120
          %437 = vst.msk [vmem:[#allocation4] sm:$0xff] %vm436, 0.0
          %438 = vst.msk [vmem:[#allocation4 + $0x8] sm:$0xff] %vm436, 0.0
          %439 = vst.msk [vmem:[#allocation4 + $0x10] sm:$0xff] %vm436, 0.0
          %440 = vst.msk [vmem:[#allocation4 + $0x18] sm:$0xff] %vm436, 0.0
        $region44: #{tpu_custom_call.1} parent=35 // pred_fallthru
          _
        %s441 = sadd.s32 %s38, %s39
        %s442 = sadd.s32 %s441, %s40
        %s443 = sld [smem:[#allocation7 + %s442]]
        %p444 = scmp.ne.s32.totalorder %s443, 0
        // Predicated region
        $region45: #{tpu_custom_call.1} parent=35 // pred_check
          %p445 = pneg %p444
        $region46: #{tpu_custom_call.1} parent=35 // pred_check_branch
          %447 = sbr.rel (%p445) target = $region48
        $region47: #{tpu_custom_call.1} parent=35 // pred_region
          %v448 = vld [vmem:[%s314] sm:$0xff]
          %v449 = vld [vmem:[%s314 + $0x8] sm:$0xff]
          %v450 = vld [vmem:[%s314 + $0x10] sm:$0xff]
          %v451 = vld [vmem:[%s314 + $0x18] sm:$0xff]
          %v452 = vmul.f32 %v448, 0.17677669
          %v453 = vmul.f32 %v449, 0.17677669
          %v454 = vmul.f32 %v450, 0.17677669
          %v455 = vmul.f32 %v451, 0.17677669
          %v456 = vld [vmem:[%s403] sm:$0xff]
          %vm457 = vcmask 261120
          %v459 = vsel %vm457, %v452, 0
          %v462 = vsel %vm457, %v453, 0
          %v465 = vsel %vm457, %v454, 0
          %v468 = vsel %vm457, %v455, 0
          %v471 = vsel %vm457, %v456, 0
          %473 = vmatprep.subr.mxu0 0.0
          %474 = vmatpush1.xpose.msra.mxu0 %v471
          %475 = vmatprep.subr.mxu0 0.0
          %476 = vmatpush1.xpose.msra.mxu0 0.0
          %477 = vmatprep.subr.mxu0 0.0
          %478 = vmatpush1.xpose.msra.mxu0 0.0
          %479 = vmatprep.subr.mxu0 0.0
          %480 = vmatpush1.xpose.msra.mxu0 0.0
          %481 = vmatprep.subr.mxu0 0.0
          %482 = vmatpush1.xpose.msra.mxu0 0.0
          %483 = vmatprep.subr.mxu0 0.0
          %484 = vmatpush1.xpose.msra.mxu0 0.0
          %485 = vmatprep.subr.mxu0 0.0
          %486 = vmatpush1.xpose.msra.mxu0 0.0
          %487 = vmatprep.subr.mxu0 0.0
          %488 = vmatpush1.xpose.msra.mxu0 0.0
          %489 = vmatprep.subr.mxu0 0.0
          %490 = vmatpush1.xpose.msra.mxu0 0.0
          %491 = vmatprep.subr.mxu0 0.0
          %492 = vmatpush1.xpose.msra.mxu0 0.0
          %493 = vmatprep.subr.mxu0 0.0
          %494 = vmatpush1.xpose.msra.mxu0 0.0
          %495 = vmatprep.subr.mxu0 0.0
          %496 = vmatpush1.xpose.msra.mxu0 0.0
          %497 = vmatprep.subr.mxu0 0.0
          %498 = vmatpush1.xpose.msra.mxu0 0.0
          %499 = vmatprep.subr.mxu0 0.0
          %500 = vmatpush1.xpose.msra.mxu0 0.0
          %501 = vmatprep.subr.mxu0 0.0
          %502 = vmatpush1.xpose.msra.mxu0 0.0
          %503 = vmatprep.subr.mxu0 0.0
          %504 = vmatpush1.xpose.msra.mxu0 0.0
          %505 = vmatprep.subr.mxu0 0.0
          %506 = vmatpush1.xpose.msra.mxu0 0.0
          %507 = vmatprep.subr.mxu0 0.0
          %508 = vmatpush1.xpose.msra.mxu0 0.0
          %509 = vmatprep.subr.mxu0 0.0
          %510 = vmatpush1.xpose.msra.mxu0 0.0
          %511 = vmatprep.subr.mxu0 0.0
          %512 = vmatpush1.xpose.msra.mxu0 0.0
          %513 = vmatprep.subr.mxu0 0.0
          %514 = vmatpush1.xpose.msra.mxu0 0.0
          %515 = vmatprep.subr.mxu0 0.0
          %516 = vmatpush1.xpose.msra.mxu0 0.0
          %517 = vmatprep.subr.mxu0 0.0
          %518 = vmatpush1.xpose.msra.mxu0 0.0
          %519 = vmatprep.subr.mxu0 0.0
          %520 = vmatpush1.xpose.msra.mxu0 0.0
          %521 = vmatprep.subr.mxu0 0.0
          %522 = vmatpush1.xpose.msra.mxu0 0.0
          %523 = vmatprep.subr.mxu0 0.0
          %524 = vmatpush1.xpose.msra.mxu0 0.0
          %525 = vmatprep.subr.mxu0 0.0
          %526 = vmatpush1.xpose.msra.mxu0 0.0
          %527 = vmatprep.subr.mxu0 0.0
          %528 = vmatpush1.xpose.msra.mxu0 0.0
          %529 = vmatprep.subr.mxu0 0.0
          %530 = vmatpush1.xpose.msra.mxu0 0.0
          %531 = vmatprep.subr.mxu0 0.0
          %532 = vmatpush1.xpose.msra.mxu0 0.0
          %533 = vmatprep.subr.mxu0 0.0
          %534 = vmatpush1.xpose.msra.mxu0 0.0
          %535 = vmatprep.subr.mxu0 0.0
          %536 = vmatpush1.xpose.msra.mxu0 0.0
          %537 = vmatprep.mubr.f32.mxu0 0.0
          %538 = vmatmul.mubr.f32.gmra.mrb[0].mxu0 %v459
          %v539 = vpop.f32.mrb[0].mxu0
          %v540 = vadd.f32 0.0, %v539
          %v541 = vpop.f32.mrb[0].mxu0
          %542 = vmatprep.mubr.f32.mxu0 0.0
          %543 = vmatmul.mubr.f32.gmra.mrb[0].mxu0 %v462
          %v544 = vpop.f32.mrb[0].mxu0
          %v545 = vadd.f32 0.0, %v544
          %v546 = vpop.f32.mrb[0].mxu0
          %547 = vmatprep.mubr.f32.mxu0 0.0
          %548 = vmatmul.mubr.f32.gmra.mrb[0].mxu0 %v465
          %v549 = vpop.f32.mrb[0].mxu0
          %v550 = vadd.f32 0.0, %v549
          %v551 = vpop.f32.mrb[0].mxu0
          %552 = vmatprep.mubr.f32.mxu0 0.0
          %553 = vmatmul.mubr.f32.gmra.mrb[0].mxu0 %v468
          %v554 = vpop.f32.mrb[0].mxu0
          %v555 = vadd.f32 0.0, %v554
          %v556 = vpop.f32.mrb[0].mxu0
          %557 = vdwg.mxu0
          %v558 = vld [vmem:[%s388] sm:$0x3]
          %v559 = vld [vmem:[%s388 + $0x2] sm:$0x3]
          %v560 = vld [vmem:[%s388 + $0x4] sm:$0x3]
          %v561 = vld [vmem:[%s388 + $0x6] sm:$0x3]
          %vm562 = vnez %v558
          %vm563 = vnez %v559
          %vm564 = vnez %v560
          %vm565 = vnez %v561
          %v566 = vsel %vm562, 16843009, 0
          %v567 = vsel %vm563, 16843009, 0
          %v568 = vsel %vm564, 16843009, 0
          %v569 = vsel %vm565, 16843009, 0
          %v570 = vunpack.c.0.s8 %v566
          %v571 = vunpack.c.0.s8 %v567
          %v572 = vunpack.c.0.s8 %v568
          %v573 = vunpack.c.0.s8 %v569
          %vm574 = vcmp.ne.s32.totalorder %v570, 0
          %vm575 = vcmp.ne.s32.totalorder %v571, 0
          %vm576 = vcmp.ne.s32.totalorder %v572, 0
          %vm577 = vcmp.ne.s32.totalorder %v573, 0
          %v578 = vsel %vm574, -1e+30, %v540
          %v579 = vsel %vm575, -1e+30, %v545
          %v580 = vsel %vm576, -1e+30, %v550
          %v581 = vsel %vm577, -1e+30, %v555
          %v582 = vld [vmem:[#allocation2] sm:$0xff]
          %v583 = vld [vmem:[#allocation2 + $0x8] sm:$0xff]
          %v584 = vld [vmem:[#allocation2 + $0x10] sm:$0xff]
          %v585 = vld [vmem:[#allocation2 + $0x18] sm:$0xff]
          %vm586 = vcmask 64512
          %v587 = vsel %vm586, %v578, -inf
          %588 = vmax.xlane.f32.xlu0 %v587
          %v589 = vpop.xlane.xlu0 %588
          %v590 = vsel %vm586, %v579, -inf
          %591 = vmax.xlane.f32.xlu0 %v590
          %v592 = vpop.xlane.xlu0 %591
          %v593 = vsel %vm586, %v580, -inf
          %594 = vmax.xlane.f32.xlu0 %v593
          %v595 = vpop.xlane.xlu0 %594
          %v596 = vsel %vm586, %v581, -inf
          %597 = vmax.xlane.f32.xlu0 %v596
          %v598 = vpop.xlane.xlu0 %597
          %v599 = vmax.f32 %v582, %v589
          %v600 = vmax.f32 %v583, %v592
          %v601 = vmax.f32 %v584, %v595
          %v602 = vmax.f32 %v585, %v598
          %v603 = vsub.f32 %v582, %v599
          %v604 = vsub.f32 %v583, %v600
          %v605 = vsub.f32 %v584, %v601
          %v606 = vsub.f32 %v585, %v602
          %v607 = vmul.f32 %v603, 1.442695
          %v608 = vpow.pop %v607
          %v609 = vmul.f32 %v604, 1.442695
          %v610 = vpow.pop %v609
          %v611 = vmul.f32 %v605, 1.442695
          %v612 = vpow.pop %v611
          %v613 = vmul.f32 %v606, 1.442695
          %v614 = vpow.pop %v613
          %616 = vset.pattern.permute.xlu0 0
          %617 = vperm.xlu0 %616, %v599
          %v618 = vpop.permute.xlu0 %617
          %621 = vset.pattern.permute.xlu0 0
          %622 = vperm.xlu0 %621, %v600
          %v623 = vpop.permute.xlu0 %622
          %626 = vset.pattern.permute.xlu0 0
          %627 = vperm.xlu0 %626, %v601
          %v628 = vpop.permute.xlu0 %627
          %631 = vset.pattern.permute.xlu0 0
          %632 = vperm.xlu0 %631, %v602
          %v633 = vpop.permute.xlu0 %632
          %v635 = vsub.f32 %v578, %v618
          %v636 = vsub.f32 %v579, %v623
          %v637 = vsub.f32 %v580, %v628
          %v638 = vsub.f32 %v581, %v633
          %v639 = vmul.f32 %v635, 1.442695
          %v640 = vpow.pop %v639
          %v641 = vmul.f32 %v636, 1.442695
          %v642 = vpow.pop %v641
          %v643 = vmul.f32 %v637, 1.442695
          %v644 = vpow.pop %v643
          %v645 = vmul.f32 %v638, 1.442695
          %v646 = vpow.pop %v645
          %v647 = vld [vmem:[#allocation3] sm:$0xff]
          %v648 = vld [vmem:[#allocation3 + $0x8] sm:$0xff]
          %v649 = vld [vmem:[#allocation3 + $0x10] sm:$0xff]
          %v650 = vld [vmem:[#allocation3 + $0x18] sm:$0xff]
          %v651 = vmul.f32 %v608, %v647
          %v652 = vmul.f32 %v610, %v648
          %v653 = vmul.f32 %v612, %v649
          %v654 = vmul.f32 %v614, %v650
          %v655 = vsel %vm586, %v640, 0.0
          %656 = vadd.xlane.f32.xlu0 %v655
          %v657 = vpop.xlane.xlu0 %656
          %v658 = vsel %vm586, %v642, 0.0
          %659 = vadd.xlane.f32.xlu0 %v658
          %v660 = vpop.xlane.xlu0 %659
          %v661 = vsel %vm586, %v644, 0.0
          %662 = vadd.xlane.f32.xlu0 %v661
          %v663 = vpop.xlane.xlu0 %662
          %v664 = vsel %vm586, %v646, 0.0
          %665 = vadd.xlane.f32.xlu0 %v664
          %v666 = vpop.xlane.xlu0 %665
          %v667 = vadd.f32 %v651, %v657
          %v668 = vadd.f32 %v652, %v660
          %v669 = vadd.f32 %v653, %v663
          %v670 = vadd.f32 %v654, %v666
          %vm671 = vcmask 7168
          %672 = vst.msk [vmem:[#allocation3] sm:$0xff] %vm671, %v667
          %673 = vst.msk [vmem:[#allocation3 + $0x8] sm:$0xff] %vm671, %v668
          %674 = vst.msk [vmem:[#allocation3 + $0x10] sm:$0xff] %vm671, %v669
          %675 = vst.msk [vmem:[#allocation3 + $0x18] sm:$0xff] %vm671, %v670
          %v676 = vld [vmem:[#allocation4] sm:$0xff]
          %v677 = vld [vmem:[#allocation4 + $0x8] sm:$0xff]
          %v678 = vld [vmem:[#allocation4 + $0x10] sm:$0xff]
          %v679 = vld [vmem:[#allocation4 + $0x18] sm:$0xff]
          %681 = vset.pattern.permute.xlu0 0
          %682 = vperm.xlu0 %681, %v608
          %v683 = vpop.permute.xlu0 %682
          %686 = vset.pattern.permute.xlu0 0
          %687 = vperm.xlu0 %686, %v610
          %v688 = vpop.permute.xlu0 %687
          %691 = vset.pattern.permute.xlu0 0
          %692 = vperm.xlu0 %691, %v612
          %v693 = vpop.permute.xlu0 %692
          %696 = vset.pattern.permute.xlu0 0
          %697 = vperm.xlu0 %696, %v614
          %v698 = vpop.permute.xlu0 %697
          %v700 = vmul.f32 %v683, %v676
          %v701 = vmul.f32 %v688, %v677
          %v702 = vmul.f32 %v693, %v678
          %v703 = vmul.f32 %v698, %v679
          %v704 = vld [vmem:[%s416] sm:$0xff]
          %v706 = vsel %vm586, %v640, 0
          %v709 = vsel %vm586, %v642, 0
          %v712 = vsel %vm586, %v644, 0
          %v715 = vsel %vm586, %v646, 0
          %717 = vmatprep.subr.mxu0 0.0
          %718 = vmatpush1.msra.mxu0 %v704
          %719 = vmatprep.subr.mxu0 0.0
          %720 = vmatpush1.msra.mxu0 0.0
          %721 = vmatprep.subr.mxu0 0.0
          %722 = vmatpush1.msra.mxu0 0.0
          %723 = vmatprep.subr.mxu0 0.0
          %724 = vmatpush1.msra.mxu0 0.0
          %725 = vmatprep.subr.mxu0 0.0
          %726 = vmatpush1.msra.mxu0 0.0
          %727 = vmatprep.subr.mxu0 0.0
          %728 = vmatpush1.msra.mxu0 0.0
          %729 = vmatprep.subr.mxu0 0.0
          %730 = vmatpush1.msra.mxu0 0.0
          %731 = vmatprep.subr.mxu0 0.0
          %732 = vmatpush1.msra.mxu0 0.0
          %733 = vmatprep.subr.mxu0 0.0
          %734 = vmatpush1.msra.mxu0 0.0
          %735 = vmatprep.subr.mxu0 0.0
          %736 = vmatpush1.msra.mxu0 0.0
          %737 = vmatprep.subr.mxu0 0.0
          %738 = vmatpush1.msra.mxu0 0.0
          %739 = vmatprep.subr.mxu0 0.0
          %740 = vmatpush1.msra.mxu0 0.0
          %741 = vmatprep.subr.mxu0 0.0
          %742 = vmatpush1.msra.mxu0 0.0
          %743 = vmatprep.subr.mxu0 0.0
          %744 = vmatpush1.msra.mxu0 0.0
          %745 = vmatprep.subr.mxu0 0.0
          %746 = vmatpush1.msra.mxu0 0.0
          %747 = vmatprep.subr.mxu0 0.0
          %748 = vmatpush1.msra.mxu0 0.0
          %749 = vmatprep.subr.mxu0 0.0
          %750 = vmatpush1.msra.mxu0 0.0
          %751 = vmatprep.subr.mxu0 0.0
          %752 = vmatpush1.msra.mxu0 0.0
          %753 = vmatprep.subr.mxu0 0.0
          %754 = vmatpush1.msra.mxu0 0.0
          %755 = vmatprep.subr.mxu0 0.0
          %756 = vmatpush1.msra.mxu0 0.0
          %757 = vmatprep.subr.mxu0 0.0
          %758 = vmatpush1.msra.mxu0 0.0
          %759 = vmatprep.subr.mxu0 0.0
          %760 = vmatpush1.msra.mxu0 0.0
          %761 = vmatprep.subr.mxu0 0.0
          %762 = vmatpush1.msra.mxu0 0.0
          %763 = vmatprep.subr.mxu0 0.0
          %764 = vmatpush1.msra.mxu0 0.0
          %765 = vmatprep.subr.mxu0 0.0
          %766 = vmatpush1.msra.mxu0 0.0
          %767 = vmatprep.subr.mxu0 0.0
          %768 = vmatpush1.msra.mxu0 0.0
          %769 = vmatprep.subr.mxu0 0.0
          %770 = vmatpush1.msra.mxu0 0.0
          %771 = vmatprep.subr.mxu0 0.0
          %772 = vmatpush1.msra.mxu0 0.0
          %773 = vmatprep.subr.mxu0 0.0
          %774 = vmatpush1.msra.mxu0 0.0
          %775 = vmatprep.subr.mxu0 0.0
          %776 = vmatpush1.msra.mxu0 0.0
          %777 = vmatprep.subr.mxu0 0.0
          %778 = vmatpush1.msra.mxu0 0.0
          %779 = vmatprep.subr.mxu0 0.0
          %780 = vmatpush1.msra.mxu0 0.0
          %781 = vmatprep.mubr.f32.mxu0 0.0
          %782 = vmatmul.mubr.f32.gmra.mrb[0].mxu0 %v706
          %v783 = vpop.f32.mrb[0].mxu0
          %v784 = vadd.f32 0.0, %v783
          %v785 = vpop.f32.mrb[0].mxu0
          %786 = vmatprep.mubr.f32.mxu0 0.0
          %787 = vmatmul.mubr.f32.gmra.mrb[0].mxu0 %v709
          %v788 = vpop.f32.mrb[0].mxu0
          %v789 = vadd.f32 0.0, %v788
          %v790 = vpop.f32.mrb[0].mxu0
          %791 = vmatprep.mubr.f32.mxu0 0.0
          %792 = vmatmul.mubr.f32.gmra.mrb[0].mxu0 %v712
          %v793 = vpop.f32.mrb[0].mxu0
          %v794 = vadd.f32 0.0, %v793
          %v795 = vpop.f32.mrb[0].mxu0
          %796 = vmatprep.mubr.f32.mxu0 0.0
          %797 = vmatmul.mubr.f32.gmra.mrb[0].mxu0 %v715
          %v798 = vpop.f32.mrb[0].mxu0
          %v799 = vadd.f32 0.0, %v798
          %v800 = vpop.f32.mrb[0].mxu0
          %801 = vdwg.mxu0
          %v802 = vadd.f32 %v700, %v784
          %v803 = vadd.f32 %v701, %v789
          %v804 = vadd.f32 %v702, %v794
          %v805 = vadd.f32 %v703, %v799
          %806 = vst.msk [vmem:[#allocation4] sm:$0xff] %vm457, %v802
          %807 = vst.msk [vmem:[#allocation4 + $0x8] sm:$0xff] %vm457, %v803
          %808 = vst.msk [vmem:[#allocation4 + $0x10] sm:$0xff] %vm457, %v804
          %809 = vst.msk [vmem:[#allocation4 + $0x18] sm:$0xff] %vm457, %v805
          %810 = vst.msk [vmem:[#allocation2] sm:$0xff] %vm671, %v599
          %811 = vst.msk [vmem:[#allocation2 + $0x8] sm:$0xff] %vm671, %v600
          %812 = vst.msk [vmem:[#allocation2 + $0x10] sm:$0xff] %vm671, %v601
          %813 = vst.msk [vmem:[#allocation2 + $0x18] sm:$0xff] %vm671, %v602
        $region48: #{tpu_custom_call.1} parent=35 // pred_fallthru
          _
        // Predicated region
        $region49: #{tpu_custom_call.1} parent=35 // pred_check
          %p814 = pneg %p423
        $region50: #{tpu_custom_call.1} parent=35 // pred_check_branch
          %816 = sbr.rel (%p814) target = $region52
        $region51: #{tpu_custom_call.1} parent=35 // pred_region
          %v817 = vld [vmem:[#allocation3] sm:$0xff]
          %v818 = vld [vmem:[#allocation3 + $0x8] sm:$0xff]
          %v819 = vld [vmem:[#allocation3 + $0x10] sm:$0xff]
          %v820 = vld [vmem:[#allocation3 + $0x18] sm:$0xff]
          %vm821 = vcmp.eq.f32.partialorder %v817, 0.0
          %vm822 = vcmp.eq.f32.partialorder %v818, 0.0
          %vm823 = vcmp.eq.f32.partialorder %v819, 0.0
          %vm824 = vcmp.eq.f32.partialorder %v820, 0.0
          %v825 = vsel %vm821, 1.0, %v817
          %v826 = vsel %vm822, 1.0, %v818
          %v827 = vsel %vm823, 1.0, %v819
          %v828 = vsel %vm824, 1.0, %v820
          %v829 = vrcp.pop %v825
          %v830 = vrcp.pop %v826
          %v831 = vrcp.pop %v827
          %v832 = vrcp.pop %v828
          %v833 = vld [vmem:[#allocation4] sm:$0xff]
          %v834 = vld [vmem:[#allocation4 + $0x8] sm:$0xff]
          %v835 = vld [vmem:[#allocation4 + $0x10] sm:$0xff]
          %v836 = vld [vmem:[#allocation4 + $0x18] sm:$0xff]
          %838 = vset.pattern.permute.xlu0 0
          %839 = vperm.xlu0 %838, %v829
          %v840 = vpop.permute.xlu0 %839
          %843 = vset.pattern.permute.xlu0 0
          %844 = vperm.xlu0 %843, %v830
          %v845 = vpop.permute.xlu0 %844
          %848 = vset.pattern.permute.xlu0 0
          %849 = vperm.xlu0 %848, %v831
          %v850 = vpop.permute.xlu0 %849
          %853 = vset.pattern.permute.xlu0 0
          %854 = vperm.xlu0 %853, %v832
          %v855 = vpop.permute.xlu0 %854
          %v857 = vmul.f32 %v833, %v840
          %v858 = vmul.f32 %v834, %v845
          %v859 = vmul.f32 %v835, %v850
          %v860 = vmul.f32 %v836, %v855
          %vm861 = vcmask 261120
          %862 = vst.msk [vmem:[%s373] sm:$0xff] %vm861, %v857
          %863 = vst.msk [vmem:[%s373 + $0x8] sm:$0xff] %vm861, %v858
          %864 = vst.msk [vmem:[%s373 + $0x10] sm:$0xff] %vm861, %v859
          %865 = vst.msk [vmem:[%s373 + $0x18] sm:$0xff] %vm861, %v860
        $region52: #{tpu_custom_call.1} parent=35 // pred_fallthru
          _
        %s866 = sand.u32 %s194, 1
        %s867 = scalar_lea.sflag [#allocation10], %s866
        %s868 = sand.u32 %s194, 1
        %s869 = smul.addr %s868, 32
        %s870 = scalar_lea.vmem [#allocation11], %s869
        // Predicated region
        $region53: #{tpu_custom_call.1} parent=35 // pred_check
          %p871 = pneg %p204
        $region54: #{tpu_custom_call.1} parent=35 // pred_check_branch
          %873 = sbr.rel (%p871) target = $region56
        $region55: #{tpu_custom_call.1} parent=35 // pred_region
          %s874 = smul.u32 4, %s39
          %s876 = ssub.s32 512, 512
          %877 = vsyncadd %s867, %s876
          %s878 = smul.addr %s38, 4
          %s879 = sadd.s32 %s874, %s878
          %s880 = smul.addr %s879, 128
          %s881 = scalar_lea.hbm %s6, %s880
          %s882 = sshll.u32 %s870, 4
          %s883 = int_to_ptr.vmem [resolvable:$true] %s882
          %888 = dma.vmem_to_hbm [thread:$0]  %s883, 512, %s881, %s867, 128, 128, 8
        $region56: #{tpu_custom_call.1} parent=35 // pred_fallthru
          _
      $region36: #{tpu_custom_call.1} parent=5 // pred_fallthru
        _
      %p889 = scmp.le.s32.totalorder 2, %s28
      // Predicated region
      $region57: #{tpu_custom_call.1} parent=5 // pred_check
        %p890 = pneg %p889
      $region58: #{tpu_custom_call.1} parent=5 // pred_check_branch
        %892 = sbr.rel (%p890) target = $region60
      $region59: #{tpu_custom_call.1} parent=5 // pred_region
        %s893 = ssub.s32 %s28, 2
        // Predicated region
        $region61: #{tpu_custom_call.1} parent=59 // pred_check
          %p894 = pneg %p210
        $region62: #{tpu_custom_call.1} parent=59 // pred_check_branch
          %896 = sbr.rel (%p894) target = $region64
        $region63: #{tpu_custom_call.1} parent=59 // pred_region
          %s897 = sand.u32 %s195, 1
          %s898 = scalar_lea.sflag [#allocation10], %s897
          %s899 = sand.u32 %s195, 1
          %s900 = smul.addr %s899, 32
          %s901 = scalar_lea.vmem [#allocation11], %s900
          %902 = dma.done %s898, 512
        $region64: #{tpu_custom_call.1} parent=59 // pred_fallthru
          _
      $region60: #{tpu_custom_call.1} parent=5 // pred_fallthru
        _
    $region6: #{tpu_custom_call.1} parent=1 // loop_footer
      %s32 = sadd.s32 1, %s28
    $region7: #{tpu_custom_call.1} parent=1 // loop_footer_branch
      %27 = sbr.rel target = $region3
    $region8: #{tpu_custom_call.1} parent=1 // loop_exit
      _
    %903 = vsyncpa [#allocation9], 1
    %s904 = scalar_lea.sflag [#allocation9], 1
    %905 = vsyncpa %s904, 1
    %906 = vsyncpa [#allocation10], 1
    %s907 = scalar_lea.sflag [#allocation10], 1
    %908 = vsyncpa %s907, 1

</llo_original>
